<compile_context>
chip_gen: v6e
topology: v6e:2x2x1
jax: 0.10.0
libtpu: 0.0.40
codegen_flags: <defaults>
</compile_context>

<pallas_src>
import jax
import jax.numpy as jnp
from jax.experimental import pallas as pl
from jax.experimental.pallas import tpu as pltpu

LANE = 128
MAX_BATCH_TILE = 16384  # batch columns per grid step; ~5 MiB VMEM incl. dbl-buffer


def policy_net_kernel(x_ref, w1_ref, b1_ref, w2_ref, b2_ref, w3_ref, b3_ref,
                      o_ref):
    """sigmoid(W3 @ relu(W2 @ relu(W1 @ x + b1) + b2) + b3) for one batch tile.

    All activations are [features, batch_tile]: features on sublanes, batch on
    lanes, so every vector op is fully lane-dense and the MXU gets a full-width
    N (=batch) dimension.
    """
    x = x_ref[...]                                             # [in, tile]

    h1 = jnp.dot(w1_ref[...], x, preferred_element_type=jnp.float32)
    h1 = jnp.maximum(h1 + b1_ref[...], 0.0)                    # [hid, tile]

    h2 = jnp.dot(w2_ref[...], h1, preferred_element_type=jnp.float32)
    h2 = jnp.maximum(h2 + b2_ref[...], 0.0)                    # [hid, tile]

    z3 = jnp.dot(w3_ref[...], h2, preferred_element_type=jnp.float32)
    z3 = z3 + b3_ref[...]                                      # [out, tile]
    o_ref[...] = jax.nn.sigmoid(z3).astype(o_ref.dtype)


def _round_up(n, m):
    return ((n + m - 1) // m) * m


def _num_tensorcores():
    """Best-effort TensorCores-per-device (v7x / v4 / v5p megacore = 2)."""
    try:
        kind = jax.devices()[0].device_kind.lower()
    except Exception:
        return 1
    if any(tag in kind for tag in ("v7", "tpu7", "7x", "v4", "v5p")):
        return 2
    return 1


def _choose_batch_tile(padded_batch, num_tc):
    """padded_batch is a multiple of LANE.

    Single TC (v5e/v6e): one big step (amortize ~600-cycle per-step overhead).
    Two TCs (v7x): >=2 equal LANE-aligned steps so megacore can split the
    'parallel' batch axis, still using the largest tile that fits the budget.
    """
    if num_tc >= 2 and padded_batch >= 2 * LANE:
        half = (padded_batch // (2 * LANE)) * LANE
        return max(LANE, min(MAX_BATCH_TILE, half))
    return min(padded_batch, MAX_BATCH_TILE)


def policy_net_forward(x, params, *, batch_tile=None):
    """x: [B, input_size] float32.  Returns [B, output_size] float32.

    params (PyTorch nn.Linear layout): w*: [out, in], b*: [out, 1].
    """
    w1, b1, w2, b2, w3, b3 = (params["w1"], params["b1"], params["w2"],
                              params["b2"], params["w3"], params["b3"])
    B, in_dim = x.shape
    hid = w1.shape[0]
    out_dim = w3.shape[0]

    num_tc = _num_tensorcores()

    # Batch on lanes: pad to a multiple of 128 lanes, pick the tile, then pad
    # to a multiple of the tile.  Zero-padded columns are sliced off at the end.
    Bp = _round_up(max(B, LANE), LANE)
    if batch_tile is None:
        batch_tile = _choose_batch_tile(Bp, num_tc)
    batch_tile = min(batch_tile, Bp)
    Bp = _round_up(Bp, batch_tile)

    xt = x.T                                                   # [in_dim, B]
    if Bp != B:
        xt = jnp.pad(xt, ((0, 0), (0, Bp - B)))

    grid = (Bp // batch_tile,)

    def make_call(buffered_weights):
        extra = {"pipeline_mode": pl.Buffered(1)} if buffered_weights else {}
        # Weights/biases: full block, constant index_map -> loaded once,
        # resident in VMEM across all grid steps.
        const = lambda shape: pl.BlockSpec(
            shape, lambda i: tuple(0 for _ in shape), **extra)
        return pl.pallas_call(
            policy_net_kernel,
            out_shape=jax.ShapeDtypeStruct((out_dim, Bp), jnp.float32),
            grid_spec=pltpu.PrefetchScalarGridSpec(
                num_scalar_prefetch=0,
                grid=grid,
                in_specs=[
                    pl.BlockSpec((in_dim, batch_tile), lambda i: (0, i)),  # x
                    const((hid, in_dim)),    # w1
                    const((hid, 1)),         # b1
                    const((hid, hid)),       # w2
                    const((hid, 1)),         # b2
                    const((out_dim, hid)),   # w3
                    const((out_dim, 1)),     # b3
                ],
                out_specs=pl.BlockSpec((out_dim, batch_tile), lambda i: (0, i)),
            ),
            compiler_params=pltpu.CompilerParams(
                dimension_semantics=("parallel",)),
        )

    try:
        out_t = jax.block_until_ready(
            make_call(True)(xt, w1, b1, w2, b2, w3, b3))
    except Exception:
        # Fallback if pl.Buffered(1) is not accepted by this JAX/Mosaic build.
        out_t = make_call(False)(xt, w1, b1, w2, b2, w3, b3)

    # [out_dim, Bp] -> [B, out_dim]; tiny slice/transpose (2 columns of data).
    return out_t.T[:B, :]


def init_params(key, input_size, hidden_size, output_size):
    """PyTorch-style uniform init; weights [out, in], biases [out, 1]."""
    ks = jax.random.split(key, 6)

    def linear(kw, kb, fan_in, fan_out):
        bound = 1.0 / jnp.sqrt(fan_in)
        w = jax.random.uniform(kw, (fan_out, fan_in), jnp.float32, -bound, bound)
        b = jax.random.uniform(kb, (fan_out, 1), jnp.float32, -bound, bound)
        return w, b

    w1, b1 = linear(ks[0], ks[1], input_size, hidden_size)
    w2, b2 = linear(ks[2], ks[3], hidden_size, hidden_size)
    w3, b3 = linear(ks[4], ks[5], hidden_size, output_size)
    return {"w1": w1, "b1": b1, "w2": w2, "b2": b2, "w3": w3, "b3": b3}


def reference_forward(x, p):
    xt = x.T
    h1 = jnp.maximum(p["w1"] @ xt + p["b1"], 0.0)
    h2 = jnp.maximum(p["w2"] @ h1 + p["b2"], 0.0)
    return jax.nn.sigmoid(p["w3"] @ h2 + p["b3"]).T


if __name__ == "__main__":
    input_size, hidden_size, output_size = 4, 16, 2
    batch = 256

    key = jax.random.PRNGKey(0)
    kx, kp = jax.random.split(key)
    x = jax.random.normal(kx, (batch, input_size), jnp.float32)
    params = init_params(kp, input_size, hidden_size, output_size)

    out = jax.block_until_ready(policy_net_forward(x, params))
    ref = reference_forward(x, params)
    assert out.shape == (batch, output_size), out.shape
    assert jnp.allclose(out, ref, atol=1e-4, rtol=1e-4), "mismatch vs reference"

    # Tiny, non-multiple-of-128 batch exercises the lane-padding path.
    x_small = x[:3]
    out_small = jax.block_until_ready(policy_net_forward(x_small, params))
    assert out_small.shape == (3, output_size)
    assert jnp.allclose(out_small, ref[:3], atol=1e-4, rtol=1e-4)

    print("KERNEL_OK")
</pallas_src>

<mosaic_0001>
module attributes {stable_mosaic.version = 11 : i64} {
  func.func @policy_net_kernel(%arg0: i32, %arg1: memref<4x256xf32, #tpu.memory_space<vmem>>, %arg2: memref<16x4xf32, #tpu.memory_space<vmem>>, %arg3: memref<16x1xf32, #tpu.memory_space<vmem>>, %arg4: memref<16x16xf32, #tpu.memory_space<vmem>>, %arg5: memref<16x1xf32, #tpu.memory_space<vmem>>, %arg6: memref<2x16xf32, #tpu.memory_space<vmem>>, %arg7: memref<2x1xf32, #tpu.memory_space<vmem>>, %arg8: memref<2x256xf32, #tpu.memory_space<vmem>>) attributes {dimension_semantics = [#tpu.dimension_semantics<parallel>], iteration_bounds = array<i64: 1>, scalar_prefetch = 0 : i64, scratch_operands = 0 : i64, tpu.core_type = #tpu.core_type<tc>, window_params = [{transform_indices = @transform_0, window_bounds = array<i64: 4, 256>}, {pipeline_mode = #tpu.pipeline_mode<synchronous>, transform_indices = @transform_1, window_bounds = array<i64: 16, 4>}, {pipeline_mode = #tpu.pipeline_mode<synchronous>, transform_indices = @transform_2, window_bounds = array<i64: 16, 1>}, {pipeline_mode = #tpu.pipeline_mode<synchronous>, transform_indices = @transform_3, window_bounds = array<i64: 16, 16>}, {pipeline_mode = #tpu.pipeline_mode<synchronous>, transform_indices = @transform_4, window_bounds = array<i64: 16, 1>}, {pipeline_mode = #tpu.pipeline_mode<synchronous>, transform_indices = @transform_5, window_bounds = array<i64: 2, 16>}, {pipeline_mode = #tpu.pipeline_mode<synchronous>, transform_indices = @transform_6, window_bounds = array<i64: 2, 1>}, {transform_indices = @transform_7, window_bounds = array<i64: 2, 256>}]} {
    %c0 = arith.constant 0 : index
    %c0_0 = arith.constant 0 : index
    %0 = vector.load %arg1[%c0, %c0_0] : memref<4x256xf32, #tpu.memory_space<vmem>>, vector<4x256xf32>
    %c0_1 = arith.constant 0 : index
    %c0_2 = arith.constant 0 : index
    %1 = vector.load %arg2[%c0_1, %c0_2] : memref<16x4xf32, #tpu.memory_space<vmem>>, vector<16x4xf32>
    %cst = arith.constant dense<0.000000e+00> : vector<16x256xf32>
    %2 = tpu.matmul %1, %0, %cst {dimension_numbers = #tpu.dot_dimension_numbers<[1], [0], [0], [1], [0, 0, 1, 1], [], []>} : vector<16x4xf32>, vector<4x256xf32>, vector<16x256xf32> -> vector<16x256xf32>
    %c0_3 = arith.constant 0 : index
    %c0_4 = arith.constant 0 : index
    %3 = vector.load %arg3[%c0_3, %c0_4] : memref<16x1xf32, #tpu.memory_space<vmem>>, vector<16x1xf32>
    %4 = vector.broadcast %3 : vector<16x1xf32> to vector<16x256xf32>
    %5 = arith.addf %2, %4 : vector<16x256xf32>
    %cst_5 = arith.constant 0.000000e+00 : f32
    %6 = vector.broadcast %cst_5 : f32 to vector<16x256xf32>
    %7 = arith.maximumf %5, %6 : vector<16x256xf32>
    %c0_6 = arith.constant 0 : index
    %c0_7 = arith.constant 0 : index
    %8 = vector.load %arg4[%c0_6, %c0_7] : memref<16x16xf32, #tpu.memory_space<vmem>>, vector<16x16xf32>
    %cst_8 = arith.constant dense<0.000000e+00> : vector<16x256xf32>
    %9 = tpu.matmul %8, %7, %cst_8 {dimension_numbers = #tpu.dot_dimension_numbers<[1], [0], [0], [1], [0, 0, 1, 1], [], []>} : vector<16x16xf32>, vector<16x256xf32>, vector<16x256xf32> -> vector<16x256xf32>
    %c0_9 = arith.constant 0 : index
    %c0_10 = arith.constant 0 : index
    %10 = vector.load %arg5[%c0_9, %c0_10] : memref<16x1xf32, #tpu.memory_space<vmem>>, vector<16x1xf32>
    %11 = vector.broadcast %10 : vector<16x1xf32> to vector<16x256xf32>
    %12 = arith.addf %9, %11 : vector<16x256xf32>
    %cst_11 = arith.constant 0.000000e+00 : f32
    %13 = vector.broadcast %cst_11 : f32 to vector<16x256xf32>
    %14 = arith.maximumf %12, %13 : vector<16x256xf32>
    %c0_12 = arith.constant 0 : index
    %c0_13 = arith.constant 0 : index
    %15 = vector.load %arg6[%c0_12, %c0_13] : memref<2x16xf32, #tpu.memory_space<vmem>>, vector<2x16xf32>
    %cst_14 = arith.constant dense<0.000000e+00> : vector<2x256xf32>
    %16 = tpu.matmul %15, %14, %cst_14 {dimension_numbers = #tpu.dot_dimension_numbers<[1], [0], [0], [1], [0, 0, 1, 1], [], []>} : vector<2x16xf32>, vector<16x256xf32>, vector<2x256xf32> -> vector<2x256xf32>
    %c0_15 = arith.constant 0 : index
    %c0_16 = arith.constant 0 : index
    %17 = vector.load %arg7[%c0_15, %c0_16] : memref<2x1xf32, #tpu.memory_space<vmem>>, vector<2x1xf32>
    %18 = vector.broadcast %17 : vector<2x1xf32> to vector<2x256xf32>
    %19 = arith.addf %16, %18 : vector<2x256xf32>
    %20 = arith.negf %19 : vector<2x256xf32>
    %21 = math.exp %20 : vector<2x256xf32>
    %cst_17 = arith.constant 1.000000e+00 : f32
    %22 = vector.broadcast %cst_17 : f32 to vector<2x256xf32>
    %23 = arith.addf %22, %21 : vector<2x256xf32>
    %24 = arith.divf %22, %23 : vector<2x256xf32>
    %c0_18 = arith.constant 0 : index
    %c0_19 = arith.constant 0 : index
    %25 = vector.load %arg8[%c0_18, %c0_19] : memref<2x256xf32, #tpu.memory_space<vmem>>, vector<2x256xf32>
    tpu.vector_store %arg8[%c0_18, %c0_19], %24 {strides = array<i32>} : memref<2x256xf32, #tpu.memory_space<vmem>>, vector<2x256xf32>,
    return
  }
  func.func @transform_0(%arg0: i32) -> (i32, i32) {
    %c0_i32 = arith.constant 0 : i32
    %c0_i32_0 = arith.constant 0 : i32
    return %c0_i32, %arg0 : i32, i32
  }
  func.func @transform_1(%arg0: i32) -> (i32, i32) {
    %c0_i32 = arith.constant 0 : i32
    %c0_i32_0 = arith.constant 0 : i32
    %c0_i32_1 = arith.constant 0 : i32
    return %c0_i32, %c0_i32_0 : i32, i32
  }
  func.func @transform_2(%arg0: i32) -> (i32, i32) {
    %c0_i32 = arith.constant 0 : i32
    %c0_i32_0 = arith.constant 0 : i32
    %c0_i32_1 = arith.constant 0 : i32
    return %c0_i32, %c0_i32_0 : i32, i32
  }
  func.func @transform_3(%arg0: i32) -> (i32, i32) {
    %c0_i32 = arith.constant 0 : i32
    %c0_i32_0 = arith.constant 0 : i32
    %c0_i32_1 = arith.constant 0 : i32
    return %c0_i32, %c0_i32_0 : i32, i32
  }
  func.func @transform_4(%arg0: i32) -> (i32, i32) {
    %c0_i32 = arith.constant 0 : i32
    %c0_i32_0 = arith.constant 0 : i32
    %c0_i32_1 = arith.constant 0 : i32
    return %c0_i32, %c0_i32_0 : i32, i32
  }
  func.func @transform_5(%arg0: i32) -> (i32, i32) {
    %c0_i32 = arith.constant 0 : i32
    %c0_i32_0 = arith.constant 0 : i32
    %c0_i32_1 = arith.constant 0 : i32
    return %c0_i32, %c0_i32_0 : i32, i32
  }
  func.func @transform_6(%arg0: i32) -> (i32, i32) {
    %c0_i32 = arith.constant 0 : i32
    %c0_i32_0 = arith.constant 0 : i32
    %c0_i32_1 = arith.constant 0 : i32
    return %c0_i32, %c0_i32_0 : i32, i32
  }
  func.func @transform_7(%arg0: i32) -> (i32, i32) {
    %c0_i32 = arith.constant 0 : i32
    %c0_i32_0 = arith.constant 0 : i32
    return %c0_i32, %arg0 : i32, i32
  }
}

module attributes {stable_mosaic.version = 11 : i64} {
  func.func @policy_net_kernel(%arg0: i32, %arg1: memref<4x256xf32, #tpu.memory_space<vmem>>, %arg2: memref<16x4xf32, #tpu.memory_space<vmem>>, %arg3: memref<16x1xf32, #tpu.memory_space<vmem>>, %arg4: memref<16x16xf32, #tpu.memory_space<vmem>>, %arg5: memref<16x1xf32, #tpu.memory_space<vmem>>, %arg6: memref<2x16xf32, #tpu.memory_space<vmem>>, %arg7: memref<2x1xf32, #tpu.memory_space<vmem>>, %arg8: memref<2x256xf32, #tpu.memory_space<vmem>>) attributes {dimension_semantics = [#tpu.dimension_semantics<parallel>], iteration_bounds = array<i64: 1>, scalar_prefetch = 0 : i64, scratch_operands = 0 : i64, tpu.core_type = #tpu.core_type<tc>, window_params = [{transform_indices = @transform_0, window_bounds = array<i64: 4, 256>}, {pipeline_mode = #tpu.pipeline_mode<synchronous>, transform_indices = @transform_1, window_bounds = array<i64: 16, 4>}, {pipeline_mode = #tpu.pipeline_mode<synchronous>, transform_indices = @transform_2, window_bounds = array<i64: 16, 1>}, {pipeline_mode = #tpu.pipeline_mode<synchronous>, transform_indices = @transform_3, window_bounds = array<i64: 16, 16>}, {pipeline_mode = #tpu.pipeline_mode<synchronous>, transform_indices = @transform_4, window_bounds = array<i64: 16, 1>}, {pipeline_mode = #tpu.pipeline_mode<synchronous>, transform_indices = @transform_5, window_bounds = array<i64: 2, 16>}, {pipeline_mode = #tpu.pipeline_mode<synchronous>, transform_indices = @transform_6, window_bounds = array<i64: 2, 1>}, {transform_indices = @transform_7, window_bounds = array<i64: 2, 256>}]} {
    %c0 = arith.constant 0 : index
    %c0_0 = arith.constant 0 : index
    %0 = vector.load %arg1[%c0, %c0_0] : memref<4x256xf32, #tpu.memory_space<vmem>>, vector<4x256xf32>
    %c0_1 = arith.constant 0 : index
    %c0_2 = arith.constant 0 : index
    %1 = vector.load %arg2[%c0_1, %c0_2] : memref<16x4xf32, #tpu.memory_space<vmem>>, vector<16x4xf32>
    %cst = arith.constant dense<0.000000e+00> : vector<16x256xf32>
    %2 = tpu.matmul %1, %0, %cst {dimension_numbers = #tpu.dot_dimension_numbers<[1], [0], [0], [1], [0, 0, 1, 1], [], []>} : vector<16x4xf32>, vector<4x256xf32>, vector<16x256xf32> -> vector<16x256xf32>
    %c0_3 = arith.constant 0 : index
    %c0_4 = arith.constant 0 : index
    %3 = vector.load %arg3[%c0_3, %c0_4] : memref<16x1xf32, #tpu.memory_space<vmem>>, vector<16x1xf32>
    %4 = vector.broadcast %3 : vector<16x1xf32> to vector<16x256xf32>
    %5 = arith.addf %2, %4 : vector<16x256xf32>
    %cst_5 = arith.constant 0.000000e+00 : f32
    %6 = vector.broadcast %cst_5 : f32 to vector<16x256xf32>
    %7 = arith.maximumf %5, %6 : vector<16x256xf32>
    %c0_6 = arith.constant 0 : index
    %c0_7 = arith.constant 0 : index
    %8 = vector.load %arg4[%c0_6, %c0_7] : memref<16x16xf32, #tpu.memory_space<vmem>>, vector<16x16xf32>
    %cst_8 = arith.constant dense<0.000000e+00> : vector<16x256xf32>
    %9 = tpu.matmul %8, %7, %cst_8 {dimension_numbers = #tpu.dot_dimension_numbers<[1], [0], [0], [1], [0, 0, 1, 1], [], []>} : vector<16x16xf32>, vector<16x256xf32>, vector<16x256xf32> -> vector<16x256xf32>
    %c0_9 = arith.constant 0 : index
    %c0_10 = arith.constant 0 : index
    %10 = vector.load %arg5[%c0_9, %c0_10] : memref<16x1xf32, #tpu.memory_space<vmem>>, vector<16x1xf32>
    %11 = vector.broadcast %10 : vector<16x1xf32> to vector<16x256xf32>
    %12 = arith.addf %9, %11 : vector<16x256xf32>
    %cst_11 = arith.constant 0.000000e+00 : f32
    %13 = vector.broadcast %cst_11 : f32 to vector<16x256xf32>
    %14 = arith.maximumf %12, %13 : vector<16x256xf32>
    %c0_12 = arith.constant 0 : index
    %c0_13 = arith.constant 0 : index
    %15 = vector.load %arg6[%c0_12, %c0_13] : memref<2x16xf32, #tpu.memory_space<vmem>>, vector<2x16xf32>
    %cst_14 = arith.constant dense<0.000000e+00> : vector<2x256xf32>
    %16 = tpu.matmul %15, %14, %cst_14 {dimension_numbers = #tpu.dot_dimension_numbers<[1], [0], [0], [1], [0, 0, 1, 1], [], []>} : vector<2x16xf32>, vector<16x256xf32>, vector<2x256xf32> -> vector<2x256xf32>
    %c0_15 = arith.constant 0 : index
    %c0_16 = arith.constant 0 : index
    %17 = vector.load %arg7[%c0_15, %c0_16] : memref<2x1xf32, #tpu.memory_space<vmem>>, vector<2x1xf32>
    %18 = vector.broadcast %17 : vector<2x1xf32> to vector<2x256xf32>
    %19 = arith.addf %16, %18 : vector<2x256xf32>
    %20 = arith.negf %19 : vector<2x256xf32>
    %21 = math.exp %20 : vector<2x256xf32>
    %cst_17 = arith.constant 1.000000e+00 : f32
    %22 = vector.broadcast %cst_17 : f32 to vector<2x256xf32>
    %23 = arith.addf %22, %21 : vector<2x256xf32>
    %24 = arith.divf %22, %23 : vector<2x256xf32>
    %c0_18 = arith.constant 0 : index
    %c0_19 = arith.constant 0 : index
    %25 = vector.load %arg8[%c0_18, %c0_19] : memref<2x256xf32, #tpu.memory_space<vmem>>, vector<2x256xf32>
    tpu.vector_store %arg8[%c0_18, %c0_19], %24 {strides = array<i32>} : memref<2x256xf32, #tpu.memory_space<vmem>>, vector<2x256xf32>,
    return
  }
  func.func @transform_0(%arg0: i32) -> (i32, i32) {
    %c0_i32 = arith.constant 0 : i32
    %c0_i32_0 = arith.constant 0 : i32
    return %c0_i32, %arg0 : i32, i32
  }
  func.func @transform_1(%arg0: i32) -> (i32, i32) {
    %c0_i32 = arith.constant 0 : i32
    %c0_i32_0 = arith.constant 0 : i32
    %c0_i32_1 = arith.constant 0 : i32
    return %c0_i32, %c0_i32_0 : i32, i32
  }
  func.func @transform_2(%arg0: i32) -> (i32, i32) {
    %c0_i32 = arith.constant 0 : i32
    %c0_i32_0 = arith.constant 0 : i32
    %c0_i32_1 = arith.constant 0 : i32
    return %c0_i32, %c0_i32_0 : i32, i32
  }
  func.func @transform_3(%arg0: i32) -> (i32, i32) {
    %c0_i32 = arith.constant 0 : i32
    %c0_i32_0 = arith.constant 0 : i32
    %c0_i32_1 = arith.constant 0 : i32
    return %c0_i32, %c0_i32_0 : i32, i32
  }
  func.func @transform_4(%arg0: i32) -> (i32, i32) {
    %c0_i32 = arith.constant 0 : i32
    %c0_i32_0 = arith.constant 0 : i32
    %c0_i32_1 = arith.constant 0 : i32
    return %c0_i32, %c0_i32_0 : i32, i32
  }
  func.func @transform_5(%arg0: i32) -> (i32, i32) {
    %c0_i32 = arith.constant 0 : i32
    %c0_i32_0 = arith.constant 0 : i32
    %c0_i32_1 = arith.constant 0 : i32
    return %c0_i32, %c0_i32_0 : i32, i32
  }
  func.func @transform_6(%arg0: i32) -> (i32, i32) {
    %c0_i32 = arith.constant 0 : i32
    %c0_i32_0 = arith.constant 0 : i32
    %c0_i32_1 = arith.constant 0 : i32
    return %c0_i32, %c0_i32_0 : i32, i32
  }
  func.func @transform_7(%arg0: i32) -> (i32, i32) {
    %c0_i32 = arith.constant 0 : i32
    %c0_i32_0 = arith.constant 0 : i32
    return %c0_i32, %arg0 : i32, i32
  }
}

</mosaic_0001>

<llo_original>
// kernel: tpu_custom_call.1
$region0: #{tpu_custom_call.1}
  #allocation0 [shape = 'u32[]', space=smem, size = 0x4, offset = 0x4, fixed_abs, tag = 'smem constant byte address 0x4 - core index']
  #allocation1 [shape = 'u32[144,128]{1,0:T(1,128)}', space=vmem, size = 0x12000, scoped, tag = 'internal scratch']
  %s0 = inlined_call_operand.vmem [shape: f32[4,256], index: 0, kind: input, shape index: {}]
  %s1 = inlined_call_operand.vmem [shape: f32[16,4], index: 1, kind: input, shape index: {}]
  %s2 = inlined_call_operand.vmem [shape: f32[16,1], index: 2, kind: input, shape index: {}]
  %s3 = inlined_call_operand.vmem [shape: f32[16,16], index: 3, kind: input, shape index: {}]
  %s4 = inlined_call_operand.vmem [shape: f32[16,1], index: 4, kind: input, shape index: {}]
  %s5 = inlined_call_operand.vmem [shape: f32[2,16], index: 5, kind: input, shape index: {}]
  %s6 = inlined_call_operand.vmem [shape: f32[2,1], index: 6, kind: input, shape index: {}]
  %s7 = inlined_call_operand.hbm [shape: f32[2,256], index: 7, kind: output, shape index: {}]
  %s8 = sld [smem:[#allocation0]]
  $region38: #{tpu_custom_call.1} parent=0
    _
  %s10 = ssub.s32 1, %s8
  %s11 = scalar_select 0, %s10, %s8
  $region1: #{tpu_custom_call.1} parent=0
    #allocation2 [shape = 'u8[2048]{0}', space=vmem, size = 0x800, scoped, tag = 'output window, operand 0, single buffered']
    #allocation3 [shape = 's32[1]{0}', space=sflag, size = 0x4, scoped, tag = 'scoped memory for tpu_custom_call.1']
    %12 = vsyncpa [#allocation3], 0
    // Predicated region
    $region2: #{tpu_custom_call.1} parent=1 // pred_check
      _
    $region3: #{tpu_custom_call.1} parent=1 // pred_check_branch
      %14 = sbr.rel (0) target = $region5
    $region4: #{tpu_custom_call.1} parent=1 // pred_region
      _
    $region5: #{tpu_custom_call.1} parent=1 // pred_fallthru
      _
    // Predicated region
    $region6: #{tpu_custom_call.1} parent=1 // pred_check
      _
    $region7: #{tpu_custom_call.1} parent=1 // pred_check_branch
      %16 = sbr.rel (0) target = $region9
    $region8: #{tpu_custom_call.1} parent=1 // pred_region
      _
    $region9: #{tpu_custom_call.1} parent=1 // pred_fallthru
      _
    // Predicated region
    $region10: #{tpu_custom_call.1} parent=1 // pred_check
      _
    $region11: #{tpu_custom_call.1} parent=1 // pred_check_branch
      %18 = sbr.rel (0) target = $region13
    $region12: #{tpu_custom_call.1} parent=1 // pred_region
      _
    $region13: #{tpu_custom_call.1} parent=1 // pred_fallthru
      _
    // Predicated region
    $region14: #{tpu_custom_call.1} parent=1 // pred_check
      _
    $region15: #{tpu_custom_call.1} parent=1 // pred_check_branch
      %20 = sbr.rel (0) target = $region17
    $region16: #{tpu_custom_call.1} parent=1 // pred_region
      _
    $region17: #{tpu_custom_call.1} parent=1 // pred_fallthru
      _
    // Predicated region
    $region18: #{tpu_custom_call.1} parent=1 // pred_check
      _
    $region19: #{tpu_custom_call.1} parent=1 // pred_check_branch
      %22 = sbr.rel (0) target = $region21
    $region20: #{tpu_custom_call.1} parent=1 // pred_region
      _
    $region21: #{tpu_custom_call.1} parent=1 // pred_fallthru
      _
    // Predicated region
    $region22: #{tpu_custom_call.1} parent=1 // pred_check
      _
    $region23: #{tpu_custom_call.1} parent=1 // pred_check_branch
      %24 = sbr.rel (0) target = $region25
    $region24: #{tpu_custom_call.1} parent=1 // pred_region
      _
    $region25: #{tpu_custom_call.1} parent=1 // pred_fallthru
      _
    // Predicated region
    $region26: #{tpu_custom_call.1} parent=1 // pred_check
      _
    $region27: #{tpu_custom_call.1} parent=1 // pred_check_branch
      %26 = sbr.rel (0) target = $region29
    $region28: #{tpu_custom_call.1} parent=1 // pred_region
      _
    $region29: #{tpu_custom_call.1} parent=1 // pred_fallthru
      _
    %v27 = vld [vmem:[%s0] sm:$0xff]
    %v28 = vld [vmem:[%s1] sm:$0xff]
    %v29 = vld [vmem:[%s1 + $0x8] sm:$0xff]
    %v30 = vld [vmem:[%s2] sm:$0xff]
    %v31 = vld [vmem:[%s2 + $0x8] sm:$0xff]
    %33 = vset.pattern.permute.xlu0 0
    %34 = vperm.xlu0 %33, %v30
    %v35 = vpop.permute.xlu0 %34
    %38 = vset.pattern.permute.xlu0 0
    %39 = vperm.xlu0 %38, %v31
    %v40 = vpop.permute.xlu0 %39
    %v43 = vcombine.high %v27, %v27
    %vm44 = vcmask 31744
    %v46 = vsel %vm44, %v28, 0
    %v49 = vsel %vm44, %v29, 0
    %vm51 = vcmask 1043456
    %v52 = vsel %vm51, %v27, 0
    %v54 = vsel %vm51, %v43, 0
    %56 = vmatprep.subr.mxu0 0.0
    %57 = vmatpush1.msra.mxu0 0.0
    %58 = vmatprep.subr.mxu0 0.0
    %59 = vmatpush1.msra.mxu0 0.0
    %60 = vmatprep.subr.mxu0 0.0
    %61 = vmatpush1.msra.mxu0 0.0
    %62 = vmatprep.subr.mxu0 0.0
    %63 = vmatpush1.msra.mxu0 0.0
    %64 = vmatprep.subr.mxu0 0.0
    %65 = vmatpush1.msra.mxu0 0.0
    %66 = vmatprep.subr.mxu0 0.0
    %67 = vmatpush1.msra.mxu0 0.0
    %68 = vmatprep.subr.mxu0 0.0
    %69 = vmatpush1.msra.mxu0 0.0
    %70 = vmatprep.subr.mxu0 0.0
    %71 = vmatpush1.msra.mxu0 0.0
    %72 = vmatprep.subr.mxu0 0.0
    %73 = vmatpush1.msra.mxu0 0.0
    %74 = vmatprep.subr.mxu0 0.0
    %75 = vmatpush1.msra.mxu0 0.0
    %76 = vmatprep.subr.mxu0 0.0
    %77 = vmatpush1.msra.mxu0 0.0
    %78 = vmatprep.subr.mxu0 0.0
    %79 = vmatpush1.msra.mxu0 0.0
    %80 = vmatprep.subr.mxu0 0.0
    %81 = vmatpush1.msra.mxu0 0.0
    %82 = vmatprep.subr.mxu0 0.0
    %83 = vmatpush1.msra.mxu0 0.0
    %84 = vmatprep.subr.mxu0 0.0
    %85 = vmatpush1.msra.mxu0 0.0
    %86 = vmatprep.subr.mxu0 %v54
    %87 = vmatpush1.msra.mxu0 %v52
    %88 = vmatprep.subr.mxu0 0.0
    %89 = vmatpush2.msra.mxu0 0.0
    %90 = vmatprep.subr.mxu0 0.0
    %91 = vmatpush2.msra.mxu0 0.0
    %92 = vmatprep.subr.mxu0 0.0
    %93 = vmatpush2.msra.mxu0 0.0
    %94 = vmatprep.subr.mxu0 0.0
    %95 = vmatpush2.msra.mxu0 0.0
    %96 = vmatprep.subr.mxu0 0.0
    %97 = vmatpush2.msra.mxu0 0.0
    %98 = vmatprep.subr.mxu0 0.0
    %99 = vmatpush2.msra.mxu0 0.0
    %100 = vmatprep.subr.mxu0 0.0
    %101 = vmatpush2.msra.mxu0 0.0
    %102 = vmatprep.subr.mxu0 0.0
    %103 = vmatpush2.msra.mxu0 0.0
    %104 = vmatprep.subr.mxu0 0.0
    %105 = vmatpush2.msra.mxu0 0.0
    %106 = vmatprep.subr.mxu0 0.0
    %107 = vmatpush2.msra.mxu0 0.0
    %108 = vmatprep.subr.mxu0 0.0
    %109 = vmatpush2.msra.mxu0 0.0
    %110 = vmatprep.subr.mxu0 0.0
    %111 = vmatpush2.msra.mxu0 0.0
    %112 = vmatprep.subr.mxu0 0.0
    %113 = vmatpush2.msra.mxu0 0.0
    %114 = vmatprep.subr.mxu0 0.0
    %115 = vmatpush2.msra.mxu0 0.0
    %116 = vmatprep.subr.mxu0 0.0
    %117 = vmatpush2.msra.mxu0 0.0
    %118 = vmatprep.subr.mxu0 0.0
    %119 = vmatpush2.msra.mxu0 0.0
    %120 = vmatprep.mubr.f32.mxu0 0.0
    %121 = vmatmul.mubr.f32.gmra.mxu0 %v46
    %v122 = vpop.f32.mrf.mxu0
    %v123 = vadd.f32 %v35, %v122
    %v124 = vpop.f32.mrf.mxu0
    %v125 = vadd.f32 %v35, %v124
    %126 = vmatprep.mubr.f32.mxu0 0.0
    %127 = vmatmul.mubr.f32.gmra.mxu0 %v49
    %v128 = vpop.f32.mrf.mxu0
    %v129 = vadd.f32 %v40, %v128
    %v130 = vpop.f32.mrf.mxu0
    %v131 = vadd.f32 %v40, %v130
    %132 = vdwg.mxu0
    %v133 = vmax.f32 %v123, 0.0
    %v134 = vmax.f32 %v125, 0.0
    %v135 = vmax.f32 %v129, 0.0
    %v136 = vmax.f32 %v131, 0.0
    %v137 = vld [vmem:[%s3] sm:$0xff]
    %v138 = vld [vmem:[%s3 + $0x8] sm:$0xff]
    %v139 = vld [vmem:[%s4] sm:$0xff]
    %v140 = vld [vmem:[%s4 + $0x8] sm:$0xff]
    %142 = vset.pattern.permute.xlu0 0
    %143 = vperm.xlu0 %142, %v139
    %v144 = vpop.permute.xlu0 %143
    %147 = vset.pattern.permute.xlu0 0
    %148 = vperm.xlu0 %147, %v140
    %v149 = vpop.permute.xlu0 %148
    %vm151 = vcmask 130048
    %v153 = vsel %vm151, %v137, 0
    %v156 = vsel %vm151, %v138, 0
    %158 = vmatprep.subr.mxu0 0.0
    %159 = vmatpush1.msra.mxu0 0.0
    %160 = vmatprep.subr.mxu0 0.0
    %161 = vmatpush1.msra.mxu0 0.0
    %162 = vmatprep.subr.mxu0 0.0
    %163 = vmatpush1.msra.mxu0 0.0
    %164 = vmatprep.subr.mxu0 0.0
    %165 = vmatpush1.msra.mxu0 0.0
    %166 = vmatprep.subr.mxu0 0.0
    %167 = vmatpush1.msra.mxu0 0.0
    %168 = vmatprep.subr.mxu0 0.0
    %169 = vmatpush1.msra.mxu0 0.0
    %170 = vmatprep.subr.mxu0 0.0
    %171 = vmatpush1.msra.mxu0 0.0
    %172 = vmatprep.subr.mxu0 0.0
    %173 = vmatpush1.msra.mxu0 0.0
    %174 = vmatprep.subr.mxu0 0.0
    %175 = vmatpush1.msra.mxu0 0.0
    %176 = vmatprep.subr.mxu0 0.0
    %177 = vmatpush1.msra.mxu0 0.0
    %178 = vmatprep.subr.mxu0 0.0
    %179 = vmatpush1.msra.mxu0 0.0
    %180 = vmatprep.subr.mxu0 0.0
    %181 = vmatpush1.msra.mxu0 0.0
    %182 = vmatprep.subr.mxu0 0.0
    %183 = vmatpush1.msra.mxu0 0.0
    %184 = vmatprep.subr.mxu0 0.0
    %185 = vmatpush1.msra.mxu0 0.0
    %186 = vmatprep.subr.mxu0 %v136
    %187 = vmatpush1.msra.mxu0 %v135
    %188 = vmatprep.subr.mxu0 %v134
    %189 = vmatpush1.msra.mxu0 %v133
    %190 = vmatprep.subr.mxu0 0.0
    %191 = vmatpush2.msra.mxu0 0.0
    %192 = vmatprep.subr.mxu0 0.0
    %193 = vmatpush2.msra.mxu0 0.0
    %194 = vmatprep.subr.mxu0 0.0
    %195 = vmatpush2.msra.mxu0 0.0
    %196 = vmatprep.subr.mxu0 0.0
    %197 = vmatpush2.msra.mxu0 0.0
    %198 = vmatprep.subr.mxu0 0.0
    %199 = vmatpush2.msra.mxu0 0.0
    %200 = vmatprep.subr.mxu0 0.0
    %201 = vmatpush2.msra.mxu0 0.0
    %202 = vmatprep.subr.mxu0 0.0
    %203 = vmatpush2.msra.mxu0 0.0
    %204 = vmatprep.subr.mxu0 0.0
    %205 = vmatpush2.msra.mxu0 0.0
    %206 = vmatprep.subr.mxu0 0.0
    %207 = vmatpush2.msra.mxu0 0.0
    %208 = vmatprep.subr.mxu0 0.0
    %209 = vmatpush2.msra.mxu0 0.0
    %210 = vmatprep.subr.mxu0 0.0
    %211 = vmatpush2.msra.mxu0 0.0
    %212 = vmatprep.subr.mxu0 0.0
    %213 = vmatpush2.msra.mxu0 0.0
    %214 = vmatprep.subr.mxu0 0.0
    %215 = vmatpush2.msra.mxu0 0.0
    %216 = vmatprep.subr.mxu0 0.0
    %217 = vmatpush2.msra.mxu0 0.0
    %218 = vmatprep.subr.mxu0 0.0
    %219 = vmatpush2.msra.mxu0 0.0
    %220 = vmatprep.subr.mxu0 0.0
    %221 = vmatpush2.msra.mxu0 0.0
    %222 = vmatprep.mubr.f32.mxu0 0.0
    %223 = vmatmul.mubr.f32.gmra.mxu0 %v153
    %v224 = vpop.f32.mrf.mxu0
    %v225 = vadd.f32 %v144, %v224
    %v226 = vpop.f32.mrf.mxu0
    %v227 = vadd.f32 %v144, %v226
    %228 = vmatprep.mubr.f32.mxu0 0.0
    %229 = vmatmul.mubr.f32.gmra.mxu0 %v156
    %v230 = vpop.f32.mrf.mxu0
    %v231 = vadd.f32 %v149, %v230
    %v232 = vpop.f32.mrf.mxu0
    %v233 = vadd.f32 %v149, %v232
    %234 = vdwg.mxu0
    %v235 = vmax.f32 %v225, 0.0
    %v236 = vmax.f32 %v227, 0.0
    %v237 = vmax.f32 %v231, 0.0
    %v238 = vmax.f32 %v233, 0.0
    %v239 = vld [vmem:[%s5] sm:$0x3]
    %v240 = vld [vmem:[%s6] sm:$0x3]
    %242 = vset.pattern.permute.xlu0 0
    %243 = vperm.xlu0 %242, %v240
    %v244 = vpop.permute.xlu0 %243
    %v247 = vsel %vm151, %v239, 0
    %249 = vmatprep.subr.mxu0 0.0
    %250 = vmatpush1.msra.mxu0 0.0
    %251 = vmatprep.subr.mxu0 0.0
    %252 = vmatpush1.msra.mxu0 0.0
    %253 = vmatprep.subr.mxu0 0.0
    %254 = vmatpush1.msra.mxu0 0.0
    %255 = vmatprep.subr.mxu0 0.0
    %256 = vmatpush1.msra.mxu0 0.0
    %257 = vmatprep.subr.mxu0 0.0
    %258 = vmatpush1.msra.mxu0 0.0
    %259 = vmatprep.subr.mxu0 0.0
    %260 = vmatpush1.msra.mxu0 0.0
    %261 = vmatprep.subr.mxu0 0.0
    %262 = vmatpush1.msra.mxu0 0.0
    %263 = vmatprep.subr.mxu0 0.0
    %264 = vmatpush1.msra.mxu0 0.0
    %265 = vmatprep.subr.mxu0 0.0
    %266 = vmatpush1.msra.mxu0 0.0
    %267 = vmatprep.subr.mxu0 0.0
    %268 = vmatpush1.msra.mxu0 0.0
    %269 = vmatprep.subr.mxu0 0.0
    %270 = vmatpush1.msra.mxu0 0.0
    %271 = vmatprep.subr.mxu0 0.0
    %272 = vmatpush1.msra.mxu0 0.0
    %273 = vmatprep.subr.mxu0 0.0
    %274 = vmatpush1.msra.mxu0 0.0
    %275 = vmatprep.subr.mxu0 0.0
    %276 = vmatpush1.msra.mxu0 0.0
    %277 = vmatprep.subr.mxu0 %v238
    %278 = vmatpush1.msra.mxu0 %v237
    %279 = vmatprep.subr.mxu0 %v236
    %280 = vmatpush1.msra.mxu0 %v235
    %281 = vmatprep.subr.mxu0 0.0
    %282 = vmatpush2.msra.mxu0 0.0
    %283 = vmatprep.subr.mxu0 0.0
    %284 = vmatpush2.msra.mxu0 0.0
    %285 = vmatprep.subr.mxu0 0.0
    %286 = vmatpush2.msra.mxu0 0.0
    %287 = vmatprep.subr.mxu0 0.0
    %288 = vmatpush2.msra.mxu0 0.0
    %289 = vmatprep.subr.mxu0 0.0
    %290 = vmatpush2.msra.mxu0 0.0
    %291 = vmatprep.subr.mxu0 0.0
    %292 = vmatpush2.msra.mxu0 0.0
    %293 = vmatprep.subr.mxu0 0.0
    %294 = vmatpush2.msra.mxu0 0.0
    %295 = vmatprep.subr.mxu0 0.0
    %296 = vmatpush2.msra.mxu0 0.0
    %297 = vmatprep.subr.mxu0 0.0
    %298 = vmatpush2.msra.mxu0 0.0
    %299 = vmatprep.subr.mxu0 0.0
    %300 = vmatpush2.msra.mxu0 0.0
    %301 = vmatprep.subr.mxu0 0.0
    %302 = vmatpush2.msra.mxu0 0.0
    %303 = vmatprep.subr.mxu0 0.0
    %304 = vmatpush2.msra.mxu0 0.0
    %305 = vmatprep.subr.mxu0 0.0
    %306 = vmatpush2.msra.mxu0 0.0
    %307 = vmatprep.subr.mxu0 0.0
    %308 = vmatpush2.msra.mxu0 0.0
    %309 = vmatprep.subr.mxu0 0.0
    %310 = vmatpush2.msra.mxu0 0.0
    %311 = vmatprep.subr.mxu0 0.0
    %312 = vmatpush2.msra.mxu0 0.0
    %313 = vmatprep.mubr.f32.mxu0 0.0
    %314 = vmatmul.mubr.f32.gmra.mxu0 %v247
    %v315 = vpop.f32.mrf.mxu0
    %v316 = vadd.f32 %v244, %v315
    %v317 = vpop.f32.mrf.mxu0
    %v318 = vadd.f32 %v244, %v317
    %319 = vdwg.mxu0
    %v320 = vxor.u32 %v316, 2147483648
    %v321 = vxor.u32 %v318, 2147483648
    %v322 = vmul.f32 %v320, 1.442695
    %v323 = vpow.pop %v322
    %v324 = vmul.f32 %v321, 1.442695
    %v325 = vpow.pop %v324
    %v326 = vadd.f32 %v323, 1.0
    %v327 = vadd.f32 %v325, 1.0
    %v328 = vrcp.pop %v326
    %v329 = vmul.f32 1.0, %v328
    %v330 = vrcp.pop %v327
    %v331 = vmul.f32 1.0, %v330
    %v334 = vcombine.low %v329, %v331
    %v336 = vunpack.c.l.s4 1983009808
    %v337 = vunpack.c.0.s8 %v336
    %v338 = vlaneseq
    %v339 = vshrl.u32 %v338, 7
    %v340 = vsub.s32 %v337, %v339
    %v341 = vrot.slane %v334, %v340
    %343 = vst [vmem:[#allocation2] sm:$0xf] %v341
    // Predicated region
    $region30: #{tpu_custom_call.1} parent=1 // pred_check
      _
    $region31: #{tpu_custom_call.1} parent=1 // pred_check_branch
      %345 = sbr.rel (0) target = $region33
    $region32: #{tpu_custom_call.1} parent=1 // pred_region
      %s347 = ssub.s32 64, 64
      %348 = vsyncadd [#allocation3], %s347
      %s350 = sshll.u32 [#allocation2], 4
      %s351 = int_to_ptr.vmem [resolvable:$true] %s350
      %353 = dma.vmem_to_hbm [thread:$0]  %s351, 64, %s7, [#allocation3]
    $region33: #{tpu_custom_call.1} parent=1 // pred_fallthru
      _
    // Predicated region
    $region34: #{tpu_custom_call.1} parent=1 // pred_check
      _
    $region35: #{tpu_custom_call.1} parent=1 // pred_check_branch
      %355 = sbr.rel (0) target = $region37
    $region36: #{tpu_custom_call.1} parent=1 // pred_region
      %356 = dma.done [#allocation3], 64
    $region37: #{tpu_custom_call.1} parent=1 // pred_fallthru
      _
    %357 = vsyncpa [#allocation3], 1

// kernel: tpu_custom_call.1
$region0: #{tpu_custom_call.1}
  #allocation0 [shape = 'u32[]', space=smem, size = 0x4, offset = 0x4, fixed_abs, tag = 'smem constant byte address 0x4 - core index']
  #allocation1 [shape = 'u32[144,128]{1,0:T(1,128)}', space=vmem, size = 0x12000, scoped, tag = 'internal scratch']
  %s0 = inlined_call_operand.vmem [shape: f32[4,256], index: 0, kind: input, shape index: {}]
  %s1 = inlined_call_operand.vmem [shape: f32[16,4], index: 1, kind: input, shape index: {}]
  %s2 = inlined_call_operand.vmem [shape: f32[16,1], index: 2, kind: input, shape index: {}]
  %s3 = inlined_call_operand.vmem [shape: f32[16,16], index: 3, kind: input, shape index: {}]
  %s4 = inlined_call_operand.vmem [shape: f32[16,1], index: 4, kind: input, shape index: {}]
  %s5 = inlined_call_operand.vmem [shape: f32[2,16], index: 5, kind: input, shape index: {}]
  %s6 = inlined_call_operand.vmem [shape: f32[2,1], index: 6, kind: input, shape index: {}]
  %s7 = inlined_call_operand.hbm [shape: f32[2,256], index: 7, kind: output, shape index: {}]
  %s8 = sld [smem:[#allocation0]]
  $region38: #{tpu_custom_call.1} parent=0
    _
  %s10 = ssub.s32 1, %s8
  %s11 = scalar_select 0, %s10, %s8
  $region1: #{tpu_custom_call.1} parent=0
    #allocation2 [shape = 'u8[2048]{0}', space=vmem, size = 0x800, scoped, tag = 'output window, operand 0, single buffered']
    #allocation3 [shape = 's32[1]{0}', space=sflag, size = 0x4, scoped, tag = 'scoped memory for tpu_custom_call.1']
    %12 = vsyncpa [#allocation3], 0
    // Predicated region
    $region2: #{tpu_custom_call.1} parent=1 // pred_check
      _
    $region3: #{tpu_custom_call.1} parent=1 // pred_check_branch
      %14 = sbr.rel (0) target = $region5
    $region4: #{tpu_custom_call.1} parent=1 // pred_region
      _
    $region5: #{tpu_custom_call.1} parent=1 // pred_fallthru
      _
    // Predicated region
    $region6: #{tpu_custom_call.1} parent=1 // pred_check
      _
    $region7: #{tpu_custom_call.1} parent=1 // pred_check_branch
      %16 = sbr.rel (0) target = $region9
    $region8: #{tpu_custom_call.1} parent=1 // pred_region
      _
    $region9: #{tpu_custom_call.1} parent=1 // pred_fallthru
      _
    // Predicated region
    $region10: #{tpu_custom_call.1} parent=1 // pred_check
      _
    $region11: #{tpu_custom_call.1} parent=1 // pred_check_branch
      %18 = sbr.rel (0) target = $region13
    $region12: #{tpu_custom_call.1} parent=1 // pred_region
      _
    $region13: #{tpu_custom_call.1} parent=1 // pred_fallthru
      _
    // Predicated region
    $region14: #{tpu_custom_call.1} parent=1 // pred_check
      _
    $region15: #{tpu_custom_call.1} parent=1 // pred_check_branch
      %20 = sbr.rel (0) target = $region17
    $region16: #{tpu_custom_call.1} parent=1 // pred_region
      _
    $region17: #{tpu_custom_call.1} parent=1 // pred_fallthru
      _
    // Predicated region
    $region18: #{tpu_custom_call.1} parent=1 // pred_check
      _
    $region19: #{tpu_custom_call.1} parent=1 // pred_check_branch
      %22 = sbr.rel (0) target = $region21
    $region20: #{tpu_custom_call.1} parent=1 // pred_region
      _
    $region21: #{tpu_custom_call.1} parent=1 // pred_fallthru
      _
    // Predicated region
    $region22: #{tpu_custom_call.1} parent=1 // pred_check
      _
    $region23: #{tpu_custom_call.1} parent=1 // pred_check_branch
      %24 = sbr.rel (0) target = $region25
    $region24: #{tpu_custom_call.1} parent=1 // pred_region
      _
    $region25: #{tpu_custom_call.1} parent=1 // pred_fallthru
      _
    // Predicated region
    $region26: #{tpu_custom_call.1} parent=1 // pred_check
      _
    $region27: #{tpu_custom_call.1} parent=1 // pred_check_branch
      %26 = sbr.rel (0) target = $region29
    $region28: #{tpu_custom_call.1} parent=1 // pred_region
      _
    $region29: #{tpu_custom_call.1} parent=1 // pred_fallthru
      _
    %v27 = vld [vmem:[%s0] sm:$0xff]
    %v28 = vld [vmem:[%s1] sm:$0xff]
    %v29 = vld [vmem:[%s1 + $0x8] sm:$0xff]
    %v30 = vld [vmem:[%s2] sm:$0xff]
    %v31 = vld [vmem:[%s2 + $0x8] sm:$0xff]
    %33 = vset.pattern.permute.xlu0 0
    %34 = vperm.xlu0 %33, %v30
    %v35 = vpop.permute.xlu0 %34
    %38 = vset.pattern.permute.xlu0 0
    %39 = vperm.xlu0 %38, %v31
    %v40 = vpop.permute.xlu0 %39
    %v43 = vcombine.high %v27, %v27
    %vm44 = vcmask 31744
    %v46 = vsel %vm44, %v28, 0
    %v49 = vsel %vm44, %v29, 0
    %vm51 = vcmask 1043456
    %v52 = vsel %vm51, %v27, 0
    %v54 = vsel %vm51, %v43, 0
    %56 = vmatprep.subr.mxu0 0.0
    %57 = vmatpush1.msra.mxu0 0.0
    %58 = vmatprep.subr.mxu0 0.0
    %59 = vmatpush1.msra.mxu0 0.0
    %60 = vmatprep.subr.mxu0 0.0
    %61 = vmatpush1.msra.mxu0 0.0
    %62 = vmatprep.subr.mxu0 0.0
    %63 = vmatpush1.msra.mxu0 0.0
    %64 = vmatprep.subr.mxu0 0.0
    %65 = vmatpush1.msra.mxu0 0.0
    %66 = vmatprep.subr.mxu0 0.0
    %67 = vmatpush1.msra.mxu0 0.0
    %68 = vmatprep.subr.mxu0 0.0
    %69 = vmatpush1.msra.mxu0 0.0
    %70 = vmatprep.subr.mxu0 0.0
    %71 = vmatpush1.msra.mxu0 0.0
    %72 = vmatprep.subr.mxu0 0.0
    %73 = vmatpush1.msra.mxu0 0.0
    %74 = vmatprep.subr.mxu0 0.0
    %75 = vmatpush1.msra.mxu0 0.0
    %76 = vmatprep.subr.mxu0 0.0
    %77 = vmatpush1.msra.mxu0 0.0
    %78 = vmatprep.subr.mxu0 0.0
    %79 = vmatpush1.msra.mxu0 0.0
    %80 = vmatprep.subr.mxu0 0.0
    %81 = vmatpush1.msra.mxu0 0.0
    %82 = vmatprep.subr.mxu0 0.0
    %83 = vmatpush1.msra.mxu0 0.0
    %84 = vmatprep.subr.mxu0 0.0
    %85 = vmatpush1.msra.mxu0 0.0
    %86 = vmatprep.subr.mxu0 %v54
    %87 = vmatpush1.msra.mxu0 %v52
    %88 = vmatprep.subr.mxu0 0.0
    %89 = vmatpush2.msra.mxu0 0.0
    %90 = vmatprep.subr.mxu0 0.0
    %91 = vmatpush2.msra.mxu0 0.0
    %92 = vmatprep.subr.mxu0 0.0
    %93 = vmatpush2.msra.mxu0 0.0
    %94 = vmatprep.subr.mxu0 0.0
    %95 = vmatpush2.msra.mxu0 0.0
    %96 = vmatprep.subr.mxu0 0.0
    %97 = vmatpush2.msra.mxu0 0.0
    %98 = vmatprep.subr.mxu0 0.0
    %99 = vmatpush2.msra.mxu0 0.0
    %100 = vmatprep.subr.mxu0 0.0
    %101 = vmatpush2.msra.mxu0 0.0
    %102 = vmatprep.subr.mxu0 0.0
    %103 = vmatpush2.msra.mxu0 0.0
    %104 = vmatprep.subr.mxu0 0.0
    %105 = vmatpush2.msra.mxu0 0.0
    %106 = vmatprep.subr.mxu0 0.0
    %107 = vmatpush2.msra.mxu0 0.0
    %108 = vmatprep.subr.mxu0 0.0
    %109 = vmatpush2.msra.mxu0 0.0
    %110 = vmatprep.subr.mxu0 0.0
    %111 = vmatpush2.msra.mxu0 0.0
    %112 = vmatprep.subr.mxu0 0.0
    %113 = vmatpush2.msra.mxu0 0.0
    %114 = vmatprep.subr.mxu0 0.0
    %115 = vmatpush2.msra.mxu0 0.0
    %116 = vmatprep.subr.mxu0 0.0
    %117 = vmatpush2.msra.mxu0 0.0
    %118 = vmatprep.subr.mxu0 0.0
    %119 = vmatpush2.msra.mxu0 0.0
    %120 = vmatprep.mubr.f32.mxu0 0.0
    %121 = vmatmul.mubr.f32.gmra.mxu0 %v46
    %v122 = vpop.f32.mrf.mxu0
    %v123 = vadd.f32 %v35, %v122
    %v124 = vpop.f32.mrf.mxu0
    %v125 = vadd.f32 %v35, %v124
    %126 = vmatprep.mubr.f32.mxu0 0.0
    %127 = vmatmul.mubr.f32.gmra.mxu0 %v49
    %v128 = vpop.f32.mrf.mxu0
    %v129 = vadd.f32 %v40, %v128
    %v130 = vpop.f32.mrf.mxu0
    %v131 = vadd.f32 %v40, %v130
    %132 = vdwg.mxu0
    %v133 = vmax.f32 %v123, 0.0
    %v134 = vmax.f32 %v125, 0.0
    %v135 = vmax.f32 %v129, 0.0
    %v136 = vmax.f32 %v131, 0.0
    %v137 = vld [vmem:[%s3] sm:$0xff]
    %v138 = vld [vmem:[%s3 + $0x8] sm:$0xff]
    %v139 = vld [vmem:[%s4] sm:$0xff]
    %v140 = vld [vmem:[%s4 + $0x8] sm:$0xff]
    %142 = vset.pattern.permute.xlu0 0
    %143 = vperm.xlu0 %142, %v139
    %v144 = vpop.permute.xlu0 %143
    %147 = vset.pattern.permute.xlu0 0
    %148 = vperm.xlu0 %147, %v140
    %v149 = vpop.permute.xlu0 %148
    %vm151 = vcmask 130048
    %v153 = vsel %vm151, %v137, 0
    %v156 = vsel %vm151, %v138, 0
    %158 = vmatprep.subr.mxu0 0.0
    %159 = vmatpush1.msra.mxu0 0.0
    %160 = vmatprep.subr.mxu0 0.0
    %161 = vmatpush1.msra.mxu0 0.0
    %162 = vmatprep.subr.mxu0 0.0
    %163 = vmatpush1.msra.mxu0 0.0
    %164 = vmatprep.subr.mxu0 0.0
    %165 = vmatpush1.msra.mxu0 0.0
    %166 = vmatprep.subr.mxu0 0.0
    %167 = vmatpush1.msra.mxu0 0.0
    %168 = vmatprep.subr.mxu0 0.0
    %169 = vmatpush1.msra.mxu0 0.0
    %170 = vmatprep.subr.mxu0 0.0
    %171 = vmatpush1.msra.mxu0 0.0
    %172 = vmatprep.subr.mxu0 0.0
    %173 = vmatpush1.msra.mxu0 0.0
    %174 = vmatprep.subr.mxu0 0.0
    %175 = vmatpush1.msra.mxu0 0.0
    %176 = vmatprep.subr.mxu0 0.0
    %177 = vmatpush1.msra.mxu0 0.0
    %178 = vmatprep.subr.mxu0 0.0
    %179 = vmatpush1.msra.mxu0 0.0
    %180 = vmatprep.subr.mxu0 0.0
    %181 = vmatpush1.msra.mxu0 0.0
    %182 = vmatprep.subr.mxu0 0.0
    %183 = vmatpush1.msra.mxu0 0.0
    %184 = vmatprep.subr.mxu0 0.0
    %185 = vmatpush1.msra.mxu0 0.0
    %186 = vmatprep.subr.mxu0 %v136
    %187 = vmatpush1.msra.mxu0 %v135
    %188 = vmatprep.subr.mxu0 %v134
    %189 = vmatpush1.msra.mxu0 %v133
    %190 = vmatprep.subr.mxu0 0.0
    %191 = vmatpush2.msra.mxu0 0.0
    %192 = vmatprep.subr.mxu0 0.0
    %193 = vmatpush2.msra.mxu0 0.0
    %194 = vmatprep.subr.mxu0 0.0
    %195 = vmatpush2.msra.mxu0 0.0
    %196 = vmatprep.subr.mxu0 0.0
    %197 = vmatpush2.msra.mxu0 0.0
    %198 = vmatprep.subr.mxu0 0.0
    %199 = vmatpush2.msra.mxu0 0.0
    %200 = vmatprep.subr.mxu0 0.0
    %201 = vmatpush2.msra.mxu0 0.0
    %202 = vmatprep.subr.mxu0 0.0
    %203 = vmatpush2.msra.mxu0 0.0
    %204 = vmatprep.subr.mxu0 0.0
    %205 = vmatpush2.msra.mxu0 0.0
    %206 = vmatprep.subr.mxu0 0.0
    %207 = vmatpush2.msra.mxu0 0.0
    %208 = vmatprep.subr.mxu0 0.0
    %209 = vmatpush2.msra.mxu0 0.0
    %210 = vmatprep.subr.mxu0 0.0
    %211 = vmatpush2.msra.mxu0 0.0
    %212 = vmatprep.subr.mxu0 0.0
    %213 = vmatpush2.msra.mxu0 0.0
    %214 = vmatprep.subr.mxu0 0.0
    %215 = vmatpush2.msra.mxu0 0.0
    %216 = vmatprep.subr.mxu0 0.0
    %217 = vmatpush2.msra.mxu0 0.0
    %218 = vmatprep.subr.mxu0 0.0
    %219 = vmatpush2.msra.mxu0 0.0
    %220 = vmatprep.subr.mxu0 0.0
    %221 = vmatpush2.msra.mxu0 0.0
    %222 = vmatprep.mubr.f32.mxu0 0.0
    %223 = vmatmul.mubr.f32.gmra.mxu0 %v153
    %v224 = vpop.f32.mrf.mxu0
    %v225 = vadd.f32 %v144, %v224
    %v226 = vpop.f32.mrf.mxu0
    %v227 = vadd.f32 %v144, %v226
    %228 = vmatprep.mubr.f32.mxu0 0.0
    %229 = vmatmul.mubr.f32.gmra.mxu0 %v156
    %v230 = vpop.f32.mrf.mxu0
    %v231 = vadd.f32 %v149, %v230
    %v232 = vpop.f32.mrf.mxu0
    %v233 = vadd.f32 %v149, %v232
    %234 = vdwg.mxu0
    %v235 = vmax.f32 %v225, 0.0
    %v236 = vmax.f32 %v227, 0.0
    %v237 = vmax.f32 %v231, 0.0
    %v238 = vmax.f32 %v233, 0.0
    %v239 = vld [vmem:[%s5] sm:$0x3]
    %v240 = vld [vmem:[%s6] sm:$0x3]
    %242 = vset.pattern.permute.xlu0 0
    %243 = vperm.xlu0 %242, %v240
    %v244 = vpop.permute.xlu0 %243
    %v247 = vsel %vm151, %v239, 0
    %249 = vmatprep.subr.mxu0 0.0
    %250 = vmatpush1.msra.mxu0 0.0
    %251 = vmatprep.subr.mxu0 0.0
    %252 = vmatpush1.msra.mxu0 0.0
    %253 = vmatprep.subr.mxu0 0.0
    %254 = vmatpush1.msra.mxu0 0.0
    %255 = vmatprep.subr.mxu0 0.0
    %256 = vmatpush1.msra.mxu0 0.0
    %257 = vmatprep.subr.mxu0 0.0
    %258 = vmatpush1.msra.mxu0 0.0
    %259 = vmatprep.subr.mxu0 0.0
    %260 = vmatpush1.msra.mxu0 0.0
    %261 = vmatprep.subr.mxu0 0.0
    %262 = vmatpush1.msra.mxu0 0.0
    %263 = vmatprep.subr.mxu0 0.0
    %264 = vmatpush1.msra.mxu0 0.0
    %265 = vmatprep.subr.mxu0 0.0
    %266 = vmatpush1.msra.mxu0 0.0
    %267 = vmatprep.subr.mxu0 0.0
    %268 = vmatpush1.msra.mxu0 0.0
    %269 = vmatprep.subr.mxu0 0.0
    %270 = vmatpush1.msra.mxu0 0.0
    %271 = vmatprep.subr.mxu0 0.0
    %272 = vmatpush1.msra.mxu0 0.0
    %273 = vmatprep.subr.mxu0 0.0
    %274 = vmatpush1.msra.mxu0 0.0
    %275 = vmatprep.subr.mxu0 0.0
    %276 = vmatpush1.msra.mxu0 0.0
    %277 = vmatprep.subr.mxu0 %v238
    %278 = vmatpush1.msra.mxu0 %v237
    %279 = vmatprep.subr.mxu0 %v236
    %280 = vmatpush1.msra.mxu0 %v235
    %281 = vmatprep.subr.mxu0 0.0
    %282 = vmatpush2.msra.mxu0 0.0
    %283 = vmatprep.subr.mxu0 0.0
    %284 = vmatpush2.msra.mxu0 0.0
    %285 = vmatprep.subr.mxu0 0.0
    %286 = vmatpush2.msra.mxu0 0.0
    %287 = vmatprep.subr.mxu0 0.0
    %288 = vmatpush2.msra.mxu0 0.0
    %289 = vmatprep.subr.mxu0 0.0
    %290 = vmatpush2.msra.mxu0 0.0
    %291 = vmatprep.subr.mxu0 0.0
    %292 = vmatpush2.msra.mxu0 0.0
    %293 = vmatprep.subr.mxu0 0.0
    %294 = vmatpush2.msra.mxu0 0.0
    %295 = vmatprep.subr.mxu0 0.0
    %296 = vmatpush2.msra.mxu0 0.0
    %297 = vmatprep.subr.mxu0 0.0
    %298 = vmatpush2.msra.mxu0 0.0
    %299 = vmatprep.subr.mxu0 0.0
    %300 = vmatpush2.msra.mxu0 0.0
    %301 = vmatprep.subr.mxu0 0.0
    %302 = vmatpush2.msra.mxu0 0.0
    %303 = vmatprep.subr.mxu0 0.0
    %304 = vmatpush2.msra.mxu0 0.0
    %305 = vmatprep.subr.mxu0 0.0
    %306 = vmatpush2.msra.mxu0 0.0
    %307 = vmatprep.subr.mxu0 0.0
    %308 = vmatpush2.msra.mxu0 0.0
    %309 = vmatprep.subr.mxu0 0.0
    %310 = vmatpush2.msra.mxu0 0.0
    %311 = vmatprep.subr.mxu0 0.0
    %312 = vmatpush2.msra.mxu0 0.0
    %313 = vmatprep.mubr.f32.mxu0 0.0
    %314 = vmatmul.mubr.f32.gmra.mxu0 %v247
    %v315 = vpop.f32.mrf.mxu0
    %v316 = vadd.f32 %v244, %v315
    %v317 = vpop.f32.mrf.mxu0
    %v318 = vadd.f32 %v244, %v317
    %319 = vdwg.mxu0
    %v320 = vxor.u32 %v316, 2147483648
    %v321 = vxor.u32 %v318, 2147483648
    %v322 = vmul.f32 %v320, 1.442695
    %v323 = vpow.pop %v322
    %v324 = vmul.f32 %v321, 1.442695
    %v325 = vpow.pop %v324
    %v326 = vadd.f32 %v323, 1.0
    %v327 = vadd.f32 %v325, 1.0
    %v328 = vrcp.pop %v326
    %v329 = vmul.f32 1.0, %v328
    %v330 = vrcp.pop %v327
    %v331 = vmul.f32 1.0, %v330
    %v334 = vcombine.low %v329, %v331
    %v336 = vunpack.c.l.s4 1983009808
    %v337 = vunpack.c.0.s8 %v336
    %v338 = vlaneseq
    %v339 = vshrl.u32 %v338, 7
    %v340 = vsub.s32 %v337, %v339
    %v341 = vrot.slane %v334, %v340
    %343 = vst [vmem:[#allocation2] sm:$0xf] %v341
    // Predicated region
    $region30: #{tpu_custom_call.1} parent=1 // pred_check
      _
    $region31: #{tpu_custom_call.1} parent=1 // pred_check_branch
      %345 = sbr.rel (0) target = $region33
    $region32: #{tpu_custom_call.1} parent=1 // pred_region
      %s347 = ssub.s32 64, 64
      %348 = vsyncadd [#allocation3], %s347
      %s350 = sshll.u32 [#allocation2], 4
      %s351 = int_to_ptr.vmem [resolvable:$true] %s350
      %353 = dma.vmem_to_hbm [thread:$0]  %s351, 64, %s7, [#allocation3]
    $region33: #{tpu_custom_call.1} parent=1 // pred_fallthru
      _
    // Predicated region
    $region34: #{tpu_custom_call.1} parent=1 // pred_check
      _
    $region35: #{tpu_custom_call.1} parent=1 // pred_check_branch
      %355 = sbr.rel (0) target = $region37
    $region36: #{tpu_custom_call.1} parent=1 // pred_region
      %356 = dma.done [#allocation3], 64
    $region37: #{tpu_custom_call.1} parent=1 // pred_fallthru
      _
    %357 = vsyncpa [#allocation3], 1

</llo_original>
